<compile_context>
chip_gen: v7x
topology: tpu7x:2x2x1
jax: 0.10.0
libtpu: 0.0.40
codegen_flags: <defaults>
</compile_context>

<pallas_src>
import jax
import jax.numpy as jnp
from jax import lax
from jax.experimental import pallas as pl
from jax.experimental.pallas import tpu as pltpu


# ------------------------------ helpers --------------------------------------
def _round_up(x, m):
    return ((x + m - 1) // m) * m


def _vmem_capacity_bytes():
    """Physical VMEM on this generation (64 MiB v7x, 128 MiB v5e/v6e)."""
    try:
        info = pltpu.get_tpu_info()
        cap = getattr(info, "vmem_capacity_bytes", None)
        if cap:
            return int(cap)
    except Exception:
        pass
    return 128 * 2**20


def _footprint_bytes(ts, tk, tv):
    """Pallas double-buffers every input and the resident f32 output block."""
    return (2 * ts * tk * 2        # x  (bf16)
            + 2 * tk * tv * 2      # w  (bf16)
            + 2 * tv * 4           # bias (f32)
            + 2 * ts * tv * 4)     # out (f32)


def _choose_tiles(s_real, h_pad, v, budget):
    """Pick (TS, TK, TV) maximizing the weight tile under the VMEM budget."""
    # bf16 packs 16 sublanes per vreg -> round short/decode sequences to 16.
    ts = _round_up(s_real, 16) if s_real <= 256 else 256

    v_ceil = _round_up(v, 128)
    tv_cands = [t for t in (4096, 2048, 1024, 512, 256, 128) if t <= v_ceil]
    if not tv_cands:
        tv_cands = [128]

    tk_cands = [h_pad] + [t for t in (4096, 2048, 1024, 512, 256, 128)
                          if t < h_pad and h_pad % t == 0]

    best = None
    for tk in tk_cands:
        for tv in tv_cands:
            if _footprint_bytes(ts, tk, tv) <= budget:
                key = (tk * tv, tk)        # biggest weight tile; prefer full-H TK
                if best is None or key > best[0]:
                    best = (key, tk, tv)
    if best is None:
        return ts, 128, 128
    return ts, best[1], best[2]


# ------------------------------ Pallas kernel --------------------------------
def _make_head_kernel(TS, s_real, need_mask):
    def head_kernel(x_ref, w_ref, b_ref, o_ref):
        # grid = (V tiles, S tiles, K tiles); program_id reads hoisted to top.
        si = pl.program_id(1)
        kk = pl.program_id(2)
        last_s = pl.num_programs(1) - 1

        if need_mask:
            # Padded x rows are exact zeros, so the matmul contributes nothing
            # there: zeroing the bias on those rows at init is all the masking
            # needed.  Only the last S tile contains padding rows.
            @pl.when((kk == 0) & (si != last_s))
            def _init_plain():
                o_ref[...] = jnp.broadcast_to(b_ref[...], o_ref.shape)

            @pl.when((kk == 0) & (si == last_s))
            def _init_masked():
                row = si * TS + lax.broadcasted_iota(jnp.int32, (TS, 1), 0)
                valid = row < s_real                              # (TS, 1)
                bias_tile = jnp.broadcast_to(b_ref[...], o_ref.shape)
                o_ref[...] = jnp.where(valid, bias_tile, 0.0)
        else:
            @pl.when(kk == 0)
            def _init():
                o_ref[...] = jnp.broadcast_to(b_ref[...], o_ref.shape)

        # bf16 x bf16 -> f32 accumulate on the MXU, in place in the out block.
        o_ref[...] += jnp.dot(
            x_ref[...], w_ref[...], preferred_element_type=jnp.float32
        )

    return head_kernel


def lm_head_padded(h, w, bias, s_real):
    """h: [s_real, H] activations, w: [H, V], bias: [V] or [1, V].

    Returns f32 logits [S_aligned, V] where S_aligned = round_up(s_real, TS)
    and rows >= s_real are exactly zero."""
    S, H = h.shape
    assert S == s_real
    V = w.shape[1]
    assert w.shape[0] == H

    cap = _vmem_capacity_bytes()
    # ~48 MiB usable on 64 MiB parts (v7x), ~96 MiB on 128 MiB parts (v5e/v6e).
    budget = max(min(cap - 16 * 2**20, int(0.75 * cap)), 8 * 2**20)

    H_pad = _round_up(H, 128)
    TS, TK, TV = _choose_tiles(s_real, H_pad, V, budget)
    S_aligned = _round_up(s_real, TS)
    V_pad = _round_up(V, TV)

    # bf16 inputs -> full-rate MXU + half the HBM weight stream; f32 accumulate.
    x = jnp.pad(h.astype(jnp.bfloat16),
                ((0, S_aligned - s_real), (0, H_pad - H)))
    w_bf = jnp.pad(w.astype(jnp.bfloat16),
                   ((0, H_pad - H), (0, V_pad - V)))
    b2d = jnp.pad(bias.reshape(1, V).astype(jnp.float32),
                  ((0, 0), (0, V_pad - V)))

    n_v, n_s, n_k = V_pad // TV, S_aligned // TS, H_pad // TK
    need_mask = S_aligned > s_real
    kernel = _make_head_kernel(TS, s_real, need_mask)

    fp = _footprint_bytes(TS, TK, TV)
    vmem_limit = int(min(cap, max(fp + 16 * 2**20, 32 * 2**20)))

    cost = pl.CostEstimate(
        flops=2 * S_aligned * H_pad * V_pad,
        transcendentals=0,
        bytes_accessed=(S_aligned * H_pad * 2) * n_v       # x re-read per V tile
                       + (H_pad * V_pad * 2) * n_s         # w re-read per S tile
                       + (V_pad * 4) * n_s                 # bias
                       + S_aligned * V_pad * 4,            # f32 logits write
    )

    grid_spec = pltpu.PrefetchScalarGridSpec(
        num_scalar_prefetch=0,
        # V leading: the megacore "parallel" split shards the weight stream
        # across TensorCores even when there is a single S tile (decode).
        grid=(n_v, n_s, n_k),
        in_specs=[
            pl.BlockSpec((TS, TK), lambda j, i, k: (i, k)),   # activations
            pl.BlockSpec((TK, TV), lambda j, i, k: (k, j)),   # weights
            pl.BlockSpec((1, TV), lambda j, i, k: (0, j)),    # bias
        ],
        out_specs=pl.BlockSpec((TS, TV), lambda j, i, k: (i, j)),
    )

    out = pl.pallas_call(
        kernel,
        out_shape=jax.ShapeDtypeStruct((S_aligned, V_pad), jnp.float32),
        grid_spec=grid_spec,
        compiler_params=pltpu.CompilerParams(
            dimension_semantics=("parallel", "parallel", "arbitrary"),
            vmem_limit_bytes=vmem_limit,
        ),
        cost_estimate=cost,
    )(x, w_bf, b2d)

    return out[:, :V] if V_pad > V else out


# ------------------------- PipelineWrapper forward ----------------------------
def pipeline_wrapper_forward(
    params, tokens, input_pos=None, *, expected_seq_len=None, actual_seq_len=None
):
    """JAX equivalent of PipelineWrapper.forward."""
    expected_batch_size = tokens.shape[0] if tokens.ndim > 0 else 1

    # real data = first batch row only
    real_tokens = tokens[0:1] if tokens.ndim > 0 else tokens
    real_input_pos = (
        input_pos[0] if (input_pos is not None and input_pos.ndim == 2) else input_pos
    )

    # optional trim to actual_seq_len (static python int)
    if actual_seq_len is not None and actual_seq_len < real_tokens.shape[1]:
        real_tokens = real_tokens[:, :actual_seq_len]
        if real_input_pos is not None and real_input_pos.ndim == 1:
            real_input_pos = real_input_pos[:actual_seq_len]

    s_real = real_tokens.shape[1]

    # --- wrapped model (synthetic LM): embed + pos-embed, then Pallas head ----
    emb = params["embed"][real_tokens[0]]                    # [S_real, H]
    if real_input_pos is not None:
        emb = emb + params["pos_embed"][real_input_pos]      # [S_real, H]

    # Hot path: matmul + bias + alignment-row zeroing inside the Pallas kernel.
    logits_aligned = lm_head_padded(
        emb, params["w_head"], params["b_head"], s_real
    )                                                        # [S_aligned, V] f32
    S_aligned, V = logits_aligned.shape

    # Zero-pad the sequence dim up to expected_seq_len (never truncate,
    # matching the PyTorch wrapper).  Rows >= s_real are already exact zeros.
    if expected_seq_len is not None and expected_seq_len > s_real:
        s_out = expected_seq_len
    else:
        s_out = s_real
    if s_out <= S_aligned:
        out2d = logits_aligned[:s_out]
    else:
        out2d = jnp.concatenate(
            [logits_aligned,
             jnp.zeros((s_out - S_aligned, V), logits_aligned.dtype)],
            axis=0,
        )

    output = out2d[None]                                     # [1, S_out, V]

    # replicate across expected batch size (free broadcast, no HBM copies)
    if expected_batch_size > 1 and output.shape[0] == 1:
        output = jnp.broadcast_to(output, (expected_batch_size,) + out2d.shape)
    return output


# ------------------------------ demo ------------------------------------------
if __name__ == "__main__":
    import numpy as np

    B, S = 2, 16
    H, V, MAX_POS = 32, 256, 64
    EXPECTED_SEQ_LEN = 16
    ACTUAL_SEQ_LEN = 12

    key = jax.random.PRNGKey(0)
    k_tok, k_emb, k_pos, k_w, k_b = jax.random.split(key, 5)

    tokens = jax.random.randint(k_tok, (B, S), 0, V, dtype=jnp.int32)
    input_pos = jnp.tile(jnp.arange(S, dtype=jnp.int32)[None], (B, 1))  # [B, S]

    params = {
        "embed": jax.random.normal(k_emb, (V, H), jnp.float32) * 0.02,
        "pos_embed": jax.random.normal(k_pos, (MAX_POS, H), jnp.float32) * 0.02,
        "w_head": jax.random.normal(k_w, (H, V), jnp.float32) * 0.05,
        "b_head": jax.random.normal(k_b, (1, V), jnp.float32) * 0.01,
    }

    out = pipeline_wrapper_forward(
        params,
        tokens,
        input_pos,
        expected_seq_len=EXPECTED_SEQ_LEN,
        actual_seq_len=ACTUAL_SEQ_LEN,
    )
    out = jax.block_until_ready(out)
    assert out.shape == (B, EXPECTED_SEQ_LEN, V), out.shape

    # pure-JAX reference (same bf16-input / f32-accumulate numerics as kernel)
    rt = tokens[0:1, :ACTUAL_SEQ_LEN]
    rp = input_pos[0][:ACTUAL_SEQ_LEN]
    h_ref = params["embed"][rt[0]] + params["pos_embed"][rp]
    logits_ref = (
        jnp.dot(
            h_ref.astype(jnp.bfloat16),
            params["w_head"].astype(jnp.bfloat16),
            preferred_element_type=jnp.float32,
        )
        + params["b_head"]
    )
    ref = jnp.zeros((1, EXPECTED_SEQ_LEN, V), jnp.float32).at[:, :ACTUAL_SEQ_LEN].set(
        logits_ref[None]
    )
    ref = jnp.tile(ref, (B, 1, 1))
    np.testing.assert_allclose(np.asarray(out), np.asarray(ref), rtol=1e-4, atol=1e-4)

    print("KERNEL_OK")
</pallas_src>

<mosaic_0001>
module attributes {stable_mosaic.version = 11 : i64} {
  func.func @head_kernel(%arg0: i32, %arg1: i32, %arg2: i32, %arg3: memref<16x128xbf16, #tpu.memory_space<vmem>>, %arg4: memref<128x256xbf16, #tpu.memory_space<vmem>>, %arg5: memref<1x256xf32, #tpu.memory_space<vmem>>, %arg6: memref<16x256xf32, #tpu.memory_space<vmem>>) attributes {dimension_semantics = [#tpu.dimension_semantics<parallel>, #tpu.dimension_semantics<parallel>, #tpu.dimension_semantics<arbitrary>], iteration_bounds = array<i64: 1, 1, 1>, scalar_prefetch = 0 : i64, scratch_operands = 0 : i64, tpu.core_type = #tpu.core_type<tc>, window_params = [{transform_indices = @transform_0, window_bounds = array<i64: 16, 128>}, {transform_indices = @transform_1, window_bounds = array<i64: 128, 256>}, {transform_indices = @transform_2, window_bounds = array<i64: 1, 256>}, {transform_indices = @transform_3, window_bounds = array<i64: 16, 256>}]} {
    %c0_i32 = arith.constant 0 : i32
    %0 = arith.cmpi eq, %arg2, %c0_i32 : i32
    %c0_i32_0 = arith.constant 0 : i32
    %1 = arith.cmpi ne, %arg1, %c0_i32_0 : i32
    %2 = arith.andi %0, %1 : i1
    %3 = arith.extui %2 : i1 to i32
    %c0_i32_1 = arith.constant 0 : i32
    %4 = arith.cmpi ne, %3, %c0_i32_1 : i32
    scf.if %4 {
      %c0_12 = arith.constant 0 : index
      %c0_13 = arith.constant 0 : index
      %16 = vector.load %arg5[%c0_12, %c0_13] : memref<1x256xf32, #tpu.memory_space<vmem>>, vector<1x256xf32>
      %17 = vector.shape_cast %16 : vector<1x256xf32> to vector<1x256xf32>
      %18 = vector.broadcast %17 : vector<1x256xf32> to vector<16x256xf32>
      %c0_14 = arith.constant 0 : index
      %c0_15 = arith.constant 0 : index
      %19 = vector.load %arg6[%c0_14, %c0_15] : memref<16x256xf32, #tpu.memory_space<vmem>>, vector<16x256xf32>
      tpu.vector_store %arg6[%c0_14, %c0_15], %18 {strides = array<i32>} : memref<16x256xf32, #tpu.memory_space<vmem>>, vector<16x256xf32>,
    } else {
    }
    %c0_i32_2 = arith.constant 0 : i32
    %5 = arith.cmpi eq, %arg2, %c0_i32_2 : i32
    %c0_i32_3 = arith.constant 0 : i32
    %6 = arith.cmpi eq, %arg1, %c0_i32_3 : i32
    %7 = arith.andi %5, %6 : i1
    %8 = arith.extui %7 : i1 to i32
    %c0_i32_4 = arith.constant 0 : i32
    %9 = arith.cmpi ne, %8, %c0_i32_4 : i32
    scf.if %9 {
      %c16_i32 = arith.constant 16 : i32
      %16 = arith.muli %arg1, %c16_i32 : i32
      %17 = tpu.iota {dimensions = array<i32: 0>} : vector<16x1xi32>
      %18 = vector.broadcast %16 : i32 to vector<16x1xi32>
      %19 = arith.addi %18, %17 : vector<16x1xi32>
      %c12_i32 = arith.constant 12 : i32
      %20 = vector.broadcast %c12_i32 : i32 to vector<16x1xi32>
      %21 = arith.cmpi slt, %19, %20 : vector<16x1xi32>
      %c0_12 = arith.constant 0 : index
      %c0_13 = arith.constant 0 : index
      %22 = vector.load %arg5[%c0_12, %c0_13] : memref<1x256xf32, #tpu.memory_space<vmem>>, vector<1x256xf32>
      %23 = vector.shape_cast %22 : vector<1x256xf32> to vector<1x256xf32>
      %24 = vector.broadcast %23 : vector<1x256xf32> to vector<16x256xf32>
      %cst_14 = arith.constant 0.000000e+00 : f32
      %25 = vector.shape_cast %21 : vector<16x1xi1> to vector<16x1xi1>
      %26 = vector.broadcast %25 : vector<16x1xi1> to vector<16x256xi1>
      %27 = vector.broadcast %cst_14 : f32 to vector<16x256xf32>
      %28 = arith.select %26, %24, %27 : vector<16x256xi1>, vector<16x256xf32>
      %c0_15 = arith.constant 0 : index
      %c0_16 = arith.constant 0 : index
      %29 = vector.load %arg6[%c0_15, %c0_16] : memref<16x256xf32, #tpu.memory_space<vmem>>, vector<16x256xf32>
      tpu.vector_store %arg6[%c0_15, %c0_16], %28 {strides = array<i32>} : memref<16x256xf32, #tpu.memory_space<vmem>>, vector<16x256xf32>,
    } else {
    }
    %c0 = arith.constant 0 : index
    %c0_5 = arith.constant 0 : index
    %10 = vector.load %arg6[%c0, %c0_5] : memref<16x256xf32, #tpu.memory_space<vmem>>, vector<16x256xf32>
    %c0_6 = arith.constant 0 : index
    %c0_7 = arith.constant 0 : index
    %11 = vector.load %arg3[%c0_6, %c0_7] : memref<16x128xbf16, #tpu.memory_space<vmem>>, vector<16x128xbf16>
    %c0_8 = arith.constant 0 : index
    %c0_9 = arith.constant 0 : index
    %12 = vector.load %arg4[%c0_8, %c0_9] : memref<128x256xbf16, #tpu.memory_space<vmem>>, vector<128x256xbf16>
    %cst = arith.constant dense<0.000000e+00> : vector<16x256xf32>
    %13 = tpu.matmul %11, %12, %cst {dimension_numbers = #tpu.dot_dimension_numbers<[1], [0], [0], [1], [0, 0, 1, 1], [], []>} : vector<16x128xbf16>, vector<128x256xbf16>, vector<16x256xf32> -> vector<16x256xf32>
    %14 = arith.addf %10, %13 : vector<16x256xf32>
    %c0_10 = arith.constant 0 : index
    %c0_11 = arith.constant 0 : index
    %15 = vector.load %arg6[%c0_10, %c0_11] : memref<16x256xf32, #tpu.memory_space<vmem>>, vector<16x256xf32>
    tpu.vector_store %arg6[%c0_10, %c0_11], %14 {strides = array<i32>} : memref<16x256xf32, #tpu.memory_space<vmem>>, vector<16x256xf32>,
    return
  }
  func.func @transform_0(%arg0: i32, %arg1: i32, %arg2: i32) -> (i32, i32) {
    %c0_i32 = arith.constant 0 : i32
    return %arg1, %arg2 : i32, i32
  }
  func.func @transform_1(%arg0: i32, %arg1: i32, %arg2: i32) -> (i32, i32) {
    %c0_i32 = arith.constant 0 : i32
    return %arg2, %arg0 : i32, i32
  }
  func.func @transform_2(%arg0: i32, %arg1: i32, %arg2: i32) -> (i32, i32) {
    %c0_i32 = arith.constant 0 : i32
    %c0_i32_0 = arith.constant 0 : i32
    return %c0_i32, %arg0 : i32, i32
  }
  func.func @transform_3(%arg0: i32, %arg1: i32, %arg2: i32) -> (i32, i32) {
    %c0_i32 = arith.constant 0 : i32
    return %arg1, %arg0 : i32, i32
  }
}

</mosaic_0001>

<llo_original>
// kernel: tpu_custom_call.1
$region0: #{tpu_custom_call.1}
  #allocation0 [shape = 'u32[]', space=smem, size = 0x4, offset = 0x4, fixed_abs, tag = 'smem constant byte address 0x4 - core index']
  #allocation1 [shape = 'u32[144,128]{1,0:T(1,128)}', space=vmem, size = 0x12000, scoped, tag = 'internal scratch']
  %s0 = inlined_call_operand.hbm [shape: bf16[16,128], index: 0, kind: input, shape index: {}]
  %s1 = inlined_call_operand.hbm [shape: bf16[128,256], index: 1, kind: input, shape index: {}]
  %s2 = inlined_call_operand.vmem [shape: f32[1,256], index: 2, kind: input, shape index: {}]
  %s3 = inlined_call_operand.hbm [shape: f32[16,256], index: 3, kind: output, shape index: {}]
  %s4 = sld [smem:[#allocation0]]
  $region38: #{tpu_custom_call.1} parent=0
    _
  %s6 = ssub.s32 1, %s4
  %s7 = scalar_select 0, %s6, %s4
  $region1: #{tpu_custom_call.1} parent=0
    #allocation2 [shape = 'u8[4096]{0}', space=vmem, size = 0x1000, scoped, tag = 'input window, operand 0, single buffered']
    #allocation3 [shape = 's32[1]{0}', space=sflag, size = 0x4, scoped, tag = 'scoped memory for tpu_custom_call.1']
    #allocation4 [shape = 's32[1]{0}', space=sflag, size = 0x4, scoped, tag = 'scoped memory for tpu_custom_call.1']
    #allocation5 [shape = 'u8[65536]{0}', space=vmem, size = 0x10000, scoped, tag = 'input window, operand 1, single buffered']
    #allocation6 [shape = 's32[1]{0}', space=sflag, size = 0x4, scoped, tag = 'scoped memory for tpu_custom_call.1']
    #allocation7 [shape = 'u8[16384]{0}', space=vmem, size = 0x4000, scoped, tag = 'output window, operand 0, single buffered']
    %8 = vsyncpa [#allocation3], 0
    %9 = vsyncpa [#allocation6], 0
    %10 = vsyncpa [#allocation4], 0
    // Predicated region
    $region2: #{tpu_custom_call.1} parent=1 // pred_check
      _
    $region3: #{tpu_custom_call.1} parent=1 // pred_check_branch
      %12 = sbr.rel (0) target = $region5
    $region4: #{tpu_custom_call.1} parent=1 // pred_region
      %s14 = ssub.s32 128, 128
      %15 = vsyncadd [#allocation3], %s14
      %s16 = sshll.u32 [#allocation2], 4
      %s17 = int_to_ptr.vmem [resolvable:$true] %s16
      %22 = dma.hbm_to_vmem [thread:$0]  %s0, 128, %s17, [#allocation3], 64, 64, 4
    $region5: #{tpu_custom_call.1} parent=1 // pred_fallthru
      _
    // Predicated region
    $region6: #{tpu_custom_call.1} parent=1 // pred_check
      _
    $region7: #{tpu_custom_call.1} parent=1 // pred_check_branch
      %24 = sbr.rel (0) target = $region9
    $region8: #{tpu_custom_call.1} parent=1 // pred_region
      %s26 = ssub.s32 2048, 2048
      %27 = vsyncadd [#allocation6], %s26
      %s28 = sshll.u32 [#allocation5], 4
      %s29 = int_to_ptr.vmem [resolvable:$true] %s28
      %34 = dma.hbm_to_vmem [thread:$0]  %s1, 2048, %s29, [#allocation6], 128, 128, 8
    $region9: #{tpu_custom_call.1} parent=1 // pred_fallthru
      _
    // Predicated region
    $region10: #{tpu_custom_call.1} parent=1 // pred_check
      _
    $region11: #{tpu_custom_call.1} parent=1 // pred_check_branch
      %36 = sbr.rel (0) target = $region13
    $region12: #{tpu_custom_call.1} parent=1 // pred_region
      _
    $region13: #{tpu_custom_call.1} parent=1 // pred_fallthru
      _
    // Predicated region
    $region14: #{tpu_custom_call.1} parent=1 // pred_check
      _
    $region15: #{tpu_custom_call.1} parent=1 // pred_check_branch
      %38 = sbr.rel (0) target = $region17
    $region16: #{tpu_custom_call.1} parent=1 // pred_region
      %39 = dma.done [#allocation3], 128
    $region17: #{tpu_custom_call.1} parent=1 // pred_fallthru
      _
    // Predicated region
    $region18: #{tpu_custom_call.1} parent=1 // pred_check
      _
    $region19: #{tpu_custom_call.1} parent=1 // pred_check_branch
      %41 = sbr.rel (0) target = $region21
    $region20: #{tpu_custom_call.1} parent=1 // pred_region
      %42 = dma.done [#allocation6], 2048
    $region21: #{tpu_custom_call.1} parent=1 // pred_fallthru
      _
    %p44 = scmp.eq.s32.totalorder 0, 0
    %p45 = scmp.ne.s32.totalorder 0, 0
    %p46 = pnand %p44, %p45
    %p47 = pneg %p46
    // Predicated region
    $region22: #{tpu_custom_call.1} parent=1 // pred_check
      _
    $region23: #{tpu_custom_call.1} parent=1 // pred_check_branch
      %49 = sbr.rel (%p46) target = $region25
    $region24: #{tpu_custom_call.1} parent=1 // pred_region
      %v50 = vld [vmem:[%s2] sm:$0x3]
      %v52 = vlaneseq
      %v53 = vshrl.u32 %v52, 7
      %v54 = vsub.s32 0, %v53
      %v55 = vrot.slane %v50, %v54
      %v56 = vlaneseq
      %v57 = vshrl.u32 %v56, 7
      %v58 = vsub.s32 1, %v57
      %v59 = vrot.slane %v50, %v58
      %62 = vst [vmem:[#allocation7] sm:$0xff] %v55
      %63 = vst [vmem:[#allocation7 + $0x8] sm:$0xff] %v59
      %64 = vst [vmem:[#allocation7 + $0x10] sm:$0xff] %v55
      %65 = vst [vmem:[#allocation7 + $0x18] sm:$0xff] %v59
    $region25: #{tpu_custom_call.1} parent=1 // pred_fallthru
      _
    %p66 = scmp.eq.s32.totalorder 0, 0
    %p67 = pnand %p44, %p66
    %p68 = pneg %p67
    // Predicated region
    $region26: #{tpu_custom_call.1} parent=1 // pred_check
      _
    $region27: #{tpu_custom_call.1} parent=1 // pred_check_branch
      %70 = sbr.rel (%p67) target = $region29
    $region28: #{tpu_custom_call.1} parent=1 // pred_region
      %s71 = smul.u32 0, 16
      %v72 = vlaneseq
      %v73 = vshrl.u32 %v72, 7
      %v74 = vadd.s32 %v73, 8
      %v75 = vstv %s71
      %v76 = vadd.s32 %v75, %v73
      %v77 = vadd.s32 %v75, %v74
      %vm78 = vcmp.lt.s32.totalorder %v76, 12
      %vm79 = vcmp.lt.s32.totalorder %v77, 12
      %v80 = vld [vmem:[%s2] sm:$0x3]
      %v82 = vlaneseq
      %v83 = vshrl.u32 %v82, 7
      %v84 = vsub.s32 0, %v83
      %v85 = vrot.slane %v80, %v84
      %v86 = vlaneseq
      %v87 = vshrl.u32 %v86, 7
      %v88 = vsub.s32 1, %v87
      %v89 = vrot.slane %v80, %v88
      %v92 = vsel %vm78, 1, 0
      %v93 = vsel %vm79, 1, 0
      %vm94 = vcmp.eq.s32.totalorder %v92, 1
      %vm95 = vcmp.eq.s32.totalorder %v93, 1
      %v96 = vsel %vm94, %v85, 0.0
      %v97 = vsel %vm94, %v89, 0.0
      %v98 = vsel %vm95, %v85, 0.0
      %v99 = vsel %vm95, %v89, 0.0
      %100 = vst [vmem:[#allocation7] sm:$0xff] %v96
      %101 = vst [vmem:[#allocation7 + $0x8] sm:$0xff] %v97
      %102 = vst [vmem:[#allocation7 + $0x10] sm:$0xff] %v98
      %103 = vst [vmem:[#allocation7 + $0x18] sm:$0xff] %v99
    $region29: #{tpu_custom_call.1} parent=1 // pred_fallthru
      _
    %v104 = vld [vmem:[#allocation7] sm:$0xff]
    %v105 = vld [vmem:[#allocation7 + $0x8] sm:$0xff]
    %v106 = vld [vmem:[#allocation7 + $0x10] sm:$0xff]
    %v107 = vld [vmem:[#allocation7 + $0x18] sm:$0xff]
    %v108 = vld [vmem:[#allocation2] sm:$0xf]
    %v109 = vld [vmem:[#allocation2 + $0x4] sm:$0xf]
    %v110 = vld [vmem:[#allocation5] sm:$0xff]
    %v111 = vld [vmem:[#allocation5 + $0x8] sm:$0xff]
    %v112 = vld [vmem:[#allocation5 + $0x10] sm:$0xff]
    %v113 = vld [vmem:[#allocation5 + $0x18] sm:$0xff]
    %v114 = vld [vmem:[#allocation5 + $0x20] sm:$0xff]
    %v115 = vld [vmem:[#allocation5 + $0x28] sm:$0xff]
    %v116 = vld [vmem:[#allocation5 + $0x30] sm:$0xff]
    %v117 = vld [vmem:[#allocation5 + $0x38] sm:$0xff]
    %v118 = vld [vmem:[#allocation5 + $0x40] sm:$0xff]
    %v119 = vld [vmem:[#allocation5 + $0x48] sm:$0xff]
    %v120 = vld [vmem:[#allocation5 + $0x50] sm:$0xff]
    %v121 = vld [vmem:[#allocation5 + $0x58] sm:$0xff]
    %v122 = vld [vmem:[#allocation5 + $0x60] sm:$0xff]
    %v123 = vld [vmem:[#allocation5 + $0x68] sm:$0xff]
    %v124 = vld [vmem:[#allocation5 + $0x70] sm:$0xff]
    %v125 = vld [vmem:[#allocation5 + $0x78] sm:$0xff]
    %v128 = vunpack.c.l.b16 %v108
    %v129 = vunpack.c.l.b16 %v109
    %v130 = vpack.c.b16 %v129, %v128
    %v148 = vunpack.c.l.b16 %v110
    %v149 = vunpack.c.h.b16 %v110
    %v150 = vunpack.c.l.b16 %v111
    %v151 = vunpack.c.h.b16 %v111
    %v152 = vunpack.c.l.b16 %v112
    %v153 = vunpack.c.h.b16 %v112
    %v154 = vunpack.c.l.b16 %v113
    %v155 = vunpack.c.h.b16 %v113
    %v156 = vunpack.c.l.b16 %v114
    %v157 = vunpack.c.h.b16 %v114
    %v158 = vunpack.c.l.b16 %v115
    %v159 = vunpack.c.h.b16 %v115
    %v160 = vunpack.c.l.b16 %v116
    %v161 = vunpack.c.h.b16 %v116
    %v162 = vunpack.c.l.b16 %v117
    %v163 = vunpack.c.h.b16 %v117
    %v164 = vunpack.c.l.b16 %v118
    %v165 = vunpack.c.h.b16 %v118
    %v166 = vunpack.c.l.b16 %v119
    %v167 = vunpack.c.h.b16 %v119
    %v168 = vunpack.c.l.b16 %v120
    %v169 = vunpack.c.h.b16 %v120
    %v170 = vunpack.c.l.b16 %v121
    %v171 = vunpack.c.h.b16 %v121
    %v172 = vunpack.c.l.b16 %v122
    %v173 = vunpack.c.h.b16 %v122
    %v174 = vunpack.c.l.b16 %v123
    %v175 = vunpack.c.h.b16 %v123
    %v176 = vunpack.c.l.b16 %v124
    %v177 = vunpack.c.h.b16 %v124
    %v178 = vunpack.c.l.b16 %v125
    %v179 = vunpack.c.h.b16 %v125
    %v180 = vpack.c.b16 %v150, %v148
    %v181 = vpack.c.b16 %v151, %v149
    %v182 = vpack.c.b16 %v154, %v152
    %v183 = vpack.c.b16 %v155, %v153
    %v184 = vpack.c.b16 %v158, %v156
    %v185 = vpack.c.b16 %v159, %v157
    %v186 = vpack.c.b16 %v162, %v160
    %v187 = vpack.c.b16 %v163, %v161
    %v188 = vpack.c.b16 %v166, %v164
    %v189 = vpack.c.b16 %v167, %v165
    %v190 = vpack.c.b16 %v170, %v168
    %v191 = vpack.c.b16 %v171, %v169
    %v192 = vpack.c.b16 %v174, %v172
    %v193 = vpack.c.b16 %v175, %v173
    %v194 = vpack.c.b16 %v178, %v176
    %v195 = vpack.c.b16 %v179, %v177
    %212 = vmatprep.subr.bf16.mxu0 %v181
    %213 = vmatpush1.bf16.msra.mxu0 %v180
    %214 = vmatprep.subr.bf16.mxu0 %v183
    %215 = vmatpush1.bf16.msra.mxu0 %v182
    %216 = vmatprep.subr.bf16.mxu0 %v185
    %217 = vmatpush1.bf16.msra.mxu0 %v184
    %218 = vmatprep.subr.bf16.mxu0 %v187
    %219 = vmatpush1.bf16.msra.mxu0 %v186
    %220 = vmatprep.subr.bf16.mxu0 %v189
    %221 = vmatpush1.bf16.msra.mxu0 %v188
    %222 = vmatprep.subr.bf16.mxu0 %v191
    %223 = vmatpush1.bf16.msra.mxu0 %v190
    %224 = vmatprep.subr.bf16.mxu0 %v193
    %225 = vmatpush1.bf16.msra.mxu0 %v192
    %226 = vmatprep.subr.bf16.mxu0 %v195
    %227 = vmatpush1.bf16.msra.mxu0 %v194
    %228 = vmatprep.subr.bf16.mxu0 0
    %229 = vmatpush1.bf16.msra.mxu0 0
    %230 = vmatprep.subr.bf16.mxu0 0
    %231 = vmatpush1.bf16.msra.mxu0 0
    %232 = vmatprep.subr.bf16.mxu0 0
    %233 = vmatpush1.bf16.msra.mxu0 0
    %234 = vmatprep.subr.bf16.mxu0 0
    %235 = vmatpush1.bf16.msra.mxu0 0
    %236 = vmatprep.subr.bf16.mxu0 0
    %237 = vmatpush1.bf16.msra.mxu0 0
    %238 = vmatprep.subr.bf16.mxu0 0
    %239 = vmatpush1.bf16.msra.mxu0 0
    %240 = vmatprep.subr.bf16.mxu0 0
    %241 = vmatpush1.bf16.msra.mxu0 0
    %242 = vmatprep.subr.bf16.mxu0 0
    %243 = vmatpush1.bf16.msra.mxu0 0
    %244 = vmatprep.mubr.bf16.mxu0 0
    %245 = vmatmul.mubr.bf16.gmra.mrb[0].mxu0 %v130
    %v246 = vpop.f32.mrb[0].mxu0
    %v247 = vadd.f32 0.0, %v246
    %v248 = vpop.f32.mrb[0].mxu0
    %v249 = vadd.f32 0.0, %v248
    %v250 = vpop.f32.mrb[0].mxu0
    %v251 = vadd.f32 0.0, %v250
    %v252 = vpop.f32.mrb[0].mxu0
    %v253 = vadd.f32 0.0, %v252
    %254 = vdwg.mxu0
    %v255 = vadd.f32 %v104, %v247
    %v256 = vadd.f32 %v105, %v249
    %v257 = vadd.f32 %v106, %v251
    %v258 = vadd.f32 %v107, %v253
    %259 = vst [vmem:[#allocation7] sm:$0xff] %v255
    %260 = vst [vmem:[#allocation7 + $0x8] sm:$0xff] %v256
    %261 = vst [vmem:[#allocation7 + $0x10] sm:$0xff] %v257
    %262 = vst [vmem:[#allocation7 + $0x18] sm:$0xff] %v258
    // Predicated region
    $region30: #{tpu_custom_call.1} parent=1 // pred_check
      _
    $region31: #{tpu_custom_call.1} parent=1 // pred_check_branch
      %264 = sbr.rel (0) target = $region33
    $region32: #{tpu_custom_call.1} parent=1 // pred_region
      %s266 = ssub.s32 512, 512
      %267 = vsyncadd [#allocation4], %s266
      %s268 = sshll.u32 [#allocation7], 4
      %s269 = int_to_ptr.vmem [resolvable:$true] %s268
      %274 = dma.vmem_to_hbm [thread:$0]  %s269, 512, %s3, [#allocation4], 256, 256, 16
    $region33: #{tpu_custom_call.1} parent=1 // pred_fallthru
      _
    // Predicated region
    $region34: #{tpu_custom_call.1} parent=1 // pred_check
      _
    $region35: #{tpu_custom_call.1} parent=1 // pred_check_branch
      %276 = sbr.rel (0) target = $region37
    $region36: #{tpu_custom_call.1} parent=1 // pred_region
      %277 = dma.done [#allocation4], 512
    $region37: #{tpu_custom_call.1} parent=1 // pred_fallthru
      _
    %278 = vsyncpa [#allocation3], 1
    %279 = vsyncpa [#allocation6], 1
    %280 = vsyncpa [#allocation4], 1

</llo_original>
